<compile_context>
chip_gen: v5e
topology: v5e:2x2
jax: 0.10.0
libtpu: 0.0.40
codegen_flags: <defaults>
</compile_context>

<pallas_src>
import functools

import jax
import jax.numpy as jnp
from jax import lax
from jax.experimental import pallas as pl
from jax.experimental.pallas import tpu as pltpu

_LANES = 128
_CHUNK_TARGET_ELEMS = 1 << 17     # ~128K elements per inner chunk (bounds f32 temps)
_MIB = 1024 * 1024


def _round_up(x, m):
    return ((x + m - 1) // m) * m


def _row_align(dtype):
    # 128-lane rows per sublane-packing unit: f32 -> 8, bf16/f16 -> 16, int8 -> 32.
    return 8 * max(1, 4 // dtype.itemsize)


@functools.lru_cache(maxsize=1)
def _tpu_target():
    """Best-effort generation sizing: (multi_tensorcore, block_bytes, vmem_limit)."""
    kind = ""
    try:
        kind = jax.devices()[0].device_kind.lower().replace(" ", "")
    except Exception:
        pass
    if any(v in kind for v in ("v2", "v3", "v4", "v5", "v6")):
        # Single-TensorCore devices with 128 MiB VMEM (v5e / v6e): big blocks,
        # plain serial grid (a parallel split would be pure overhead here).
        return False, 8 * _MIB, 64 * _MIB
    # v7x (or unknown): assume 2 TensorCores and the smaller 64 MiB per-core
    # VMEM -> smaller blocks, conservative scoped limit, 2-way parallel split.
    return True, 3 * _MIB, 32 * _MIB


def _make_kernel(*, r_rows, tc, chunk_rows, n_chunks, tiles, t_per_p, has_phantom):
    """Builds the tiled partial-sum kernel (all tiling params are static)."""
    has_ragged = (tiles * tc) > r_rows

    def kernel(pred_ref, true_ref, out_ref, acc_ref):
        # pred_ref / true_ref : (N, tc, 128) blocks in their native dtype.
        # out_ref             : (1, 4, N, 128) lane-partials for this parallel half.
        # acc_ref             : (4, N, 128) f32 VMEM accumulator.
        p = pl.program_id(0)
        t = pl.program_id(1)
        nt = pl.num_programs(1)

        @pl.when(t == 0)
        def _init():
            acc_ref[...] = jnp.zeros_like(acc_ref)

        tile_idx = p * t_per_p + t          # global tile index along the row axis
        row0 = tile_idx * tc                # first global 128-lane row of this tile

        def accum(x_raw, y_raw, row_base):
            """Partial sums of one chunk; row_base=None selects the unmasked fast path."""
            x = x_raw.astype(jnp.float32)
            y = y_raw.astype(jnp.float32)
            # One exp, one log, one approximate reciprocal per element:
            #   sigmoid(x) = where(x >= 0, 1/(1+e), 1 - 1/(1+e)),  e = exp(-|x|)
            #   bce(x, y)  = max(x, 0) - x*y + log(1+e)
            e = jnp.exp(-jnp.abs(x))
            den = 1.0 + e
            inv = pl.reciprocal(den, approx=True)
            s = jnp.where(x >= 0.0, inv, 1.0 - inv)
            bce = jnp.maximum(x, 0.0) - x * y + jnp.log(den)
            if row_base is not None:
                # Ragged last tile: rows >= r_rows hold undefined block padding.
                rows = lax.broadcasted_iota(jnp.int32, x.shape, 1)
                valid = (row_base + rows) < r_rows
                zero = jnp.zeros_like(x)
                s = jnp.where(valid, s, zero)
                y = jnp.where(valid, y, zero)
                bce = jnp.where(valid, bce, zero)
            acc_ref[0, :, :] += jnp.sum(s * y, axis=1)   # intersection
            acc_ref[1, :, :] += jnp.sum(s, axis=1)       # sigmoid mass
            acc_ref[2, :, :] += jnp.sum(y, axis=1)       # target mass
            acc_ref[3, :, :] += jnp.sum(bce, axis=1)     # BCE partial

        def process(masked):
            if n_chunks == 1:
                accum(pred_ref[...], true_ref[...], row0 if masked else None)
            else:
                # Chunked inner loop bounds live f32 intermediates to a few vregs
                # while keeping the big (double-buffered) DMA block.
                def body(c, carry):
                    r0 = pl.multiple_of(c * chunk_rows, chunk_rows)
                    xs = pred_ref[:, pl.ds(r0, chunk_rows), :]
                    ys = true_ref[:, pl.ds(r0, chunk_rows), :]
                    accum(xs, ys, (row0 + r0) if masked else None)
                    return carry

                lax.fori_loop(0, n_chunks, body, 0)

        if not has_ragged and not has_phantom:
            process(False)
        elif has_ragged:
            # Fast path on all full tiles, masked path only on the last real tile;
            # phantom tiles (clamped index_map) match neither and are skipped.
            @pl.when(tile_idx < tiles - 1)
            def _fast():
                process(False)

            @pl.when(tile_idx == tiles - 1)
            def _tail():
                process(True)
        else:
            # No raggedness, but the rectangular grid has phantom tiles: skip them.
            @pl.when(tile_idx < tiles)
            def _real():
                process(False)

        @pl.when(t == nt - 1)
        def _finalize():
            out_ref[0] = acc_ref[...]

    return kernel


def _compound_partials(pred_flat, true_flat):
    """Streamed, tiled reduction of (N, D) logits / targets.

    Returns (4, N) f32: [sum(sigmoid*y), sum(sigmoid), sum(y), sum(bce)].
    """
    n, d = pred_flat.shape
    multi_tc, block_bytes, vmem_limit = _tpu_target()

    # Lane-align D.  When D is already a multiple of 128 this is a free metadata
    # reshape (no HBM copy).  Otherwise pad the last <128 columns with values
    # that contribute exactly zero to every partial sum (x=-1e4 -> sigmoid=0,
    # bce=0; y=0), so no extra in-kernel masking is needed for wrapper padding.
    pad = (-d) % _LANES
    if pad:
        pred_flat = jnp.pad(pred_flat, ((0, 0), (0, pad)), constant_values=-1e4)
        true_flat = jnp.pad(true_flat, ((0, 0), (0, pad)), constant_values=0)
    r_rows = (d + pad) // _LANES
    pred3 = pred_flat.reshape(n, r_rows, _LANES)
    true3 = true_flat.reshape(n, r_rows, _LANES)

    align = max(_row_align(pred3.dtype), _row_align(true3.dtype))
    chunk_rows = max(align,
                     min(4096, _round_up(_CHUNK_TARGET_ELEMS // (n * _LANES), align)))

    if r_rows <= chunk_rows:
        # Whole problem fits one small block: full-extent tile (always a legal
        # block shape), single chunk, no masking, no parallel split.
        tc, chunk_rows, n_chunks = r_rows, r_rows, 1
        tiles, num_parallel, t_per_p, has_phantom = 1, 1, 1, False
    else:
        itemsize = max(pred3.dtype.itemsize, true3.dtype.itemsize)
        tc_target = _round_up(max(1, block_bytes // (n * _LANES * itemsize)), chunk_rows)
        tc = max(chunk_rows, min(tc_target, (r_rows // chunk_rows) * chunk_rows))
        n_chunks = tc // chunk_rows
        tiles = pl.cdiv(r_rows, tc)
        num_parallel = 2 if (multi_tc and tiles >= 2) else 1
        t_per_p = pl.cdiv(tiles, num_parallel)
        has_phantom = num_parallel * t_per_p > tiles

    kernel = _make_kernel(r_rows=r_rows, tc=tc, chunk_rows=chunk_rows,
                          n_chunks=n_chunks, tiles=tiles, t_per_p=t_per_p,
                          has_phantom=has_phantom)

    if has_phantom:
        # Grid points past the last real tile are clamped onto it (and skipped
        # inside the kernel), so the rectangular grid never reads out of bounds.
        def row_block(p, t):
            return (0, jnp.minimum(p * t_per_p + t, tiles - 1), 0)
    else:
        def row_block(p, t):
            return (0, p * t_per_p + t, 0)

    out = pl.pallas_call(
        kernel,
        out_shape=jax.ShapeDtypeStruct((num_parallel, 4, n, _LANES), jnp.float32),
        grid_spec=pltpu.PrefetchScalarGridSpec(
            num_scalar_prefetch=0,
            grid=(num_parallel, t_per_p),
            in_specs=[
                pl.BlockSpec((n, tc, _LANES), row_block),
                pl.BlockSpec((n, tc, _LANES), row_block),
            ],
            out_specs=pl.BlockSpec((1, 4, n, _LANES), lambda p, t: (p, 0, 0, 0)),
            scratch_shapes=[pltpu.VMEM((4, n, _LANES), jnp.float32)],
        ),
        compiler_params=pltpu.CompilerParams(
            dimension_semantics=("parallel", "arbitrary"),
            vmem_limit_bytes=vmem_limit,
        ),
    )(pred3, true3)

    # Tiny cross-half / cross-lane reduce in plain JAX (lane-dense epilogue).
    return jnp.sum(out, axis=(0, 3))


class CompoundLoss:
    """JAX/Pallas port of CompoundLoss instantiated with Dice + BCE-with-logits."""

    def __init__(self, alpha1=1.0, alpha2=0.5, smooth=1.0):
        self.alpha1 = float(alpha1)
        self.alpha2 = float(alpha2)
        self.smooth = float(smooth)

    def __call__(self, y_pred, y_true, y_true_sk=None):
        # TODO(synk): y_true_sk is accepted but unused (only clDice-style losses need it).
        n = y_pred.shape[0]
        d = int(y_pred.size // n)
        # Keep native dtypes (bf16 logits / bf16-or-int mask); the kernel casts
        # to f32 internally, so no extra HBM pre-cast pass here.
        pred_flat = y_pred.reshape(n, d)
        true_flat = y_true.reshape(n, d)

        parts = _compound_partials(pred_flat, true_flat)
        inter, psum, tsum, bce_sum = parts[0], parts[1], parts[2], parts[3]

        # loss1: soft Dice (mean over batch)
        dice = (2.0 * inter + self.smooth) / (psum + tsum + self.smooth)
        l1 = jnp.mean(1.0 - dice)
        if self.alpha2 == 0.0:
            return self.alpha1 * l1

        # loss2: BCE with logits (mean over all elements)
        l2 = jnp.sum(bce_sum) / (n * d)
        return self.alpha1 * l1 + self.alpha2 * l2


def _reference(y_pred, y_true, alpha1, alpha2, smooth):
    """Pure-JAX reference for validation."""
    n = y_pred.shape[0]
    x = y_pred.reshape(n, -1).astype(jnp.float32)
    t = y_true.reshape(n, -1).astype(jnp.float32)
    p = jax.nn.sigmoid(x)
    inter = jnp.sum(p * t, axis=1)
    dice = (2.0 * inter + smooth) / (jnp.sum(p, axis=1) + jnp.sum(t, axis=1) + smooth)
    l1 = jnp.mean(1.0 - dice)
    bce = jnp.maximum(x, 0.0) - x * t + jnp.log1p(jnp.exp(-jnp.abs(x)))
    l2 = jnp.mean(bce)
    return alpha1 * l1 + alpha2 * l2


if __name__ == "__main__":
    loss_fn = CompoundLoss(alpha1=1.0, alpha2=0.5, smooth=1.0)
    loss_call = jax.jit(lambda p, t: loss_fn(p, t))

    def check(shape, key):
        k1, k2 = jax.random.split(key)
        # Native narrow dtypes: bf16 logits, bf16 binary mask (0/1 exact in bf16).
        y_pred = jax.random.normal(k1, shape, dtype=jnp.float32).astype(jnp.bfloat16)
        y_true = (jax.random.uniform(k2, shape) > 0.5).astype(jnp.bfloat16)
        out = jax.block_until_ready(loss_call(y_pred, y_true))
        ref = _reference(y_pred, y_true, 1.0, 0.5, 1.0)
        # Tolerance loosened slightly vs exact math: pl.reciprocal(approx=True)
        # is used for the sigmoid denominator (fine for a training loss).
        assert jnp.allclose(out, ref, rtol=5e-3, atol=5e-4), (shape, out, ref)

    key = jax.random.PRNGKey(0)
    ka, kb = jax.random.split(key)
    # Small retina-like toy shape (single-block fast path, D = 256 lanes).
    check((2, 1, 16, 16), ka)
    # Modest shape exercising the tiled grid, the chunked inner loop and the
    # ragged-tail masked path (D = 4*176*192 = 135168 = 1056 x 128 lanes).
    check((2, 4, 176, 192), kb)

    print("KERNEL_OK")
</pallas_src>

<mosaic_0001>
module attributes {stable_mosaic.version = 11 : i64} {
  func.func @kernel(%arg0: i32, %arg1: i32, %arg2: memref<2x2x128xbf16, #tpu.memory_space<vmem>>, %arg3: memref<2x2x128xbf16, #tpu.memory_space<vmem>>, %arg4: memref<1x4x2x128xf32, #tpu.memory_space<vmem>>, %arg5: memref<4x2x128xf32, #tpu.memory_space<vmem>>) attributes {dimension_semantics = [#tpu.dimension_semantics<parallel>, #tpu.dimension_semantics<arbitrary>], iteration_bounds = array<i64: 1, 1>, scalar_prefetch = 0 : i64, scratch_operands = 1 : i64, tpu.core_type = #tpu.core_type<tc>, window_params = [{transform_indices = @transform_0, window_bounds = array<i64: 2, 2, 128>}, {transform_indices = @transform_1, window_bounds = array<i64: 2, 2, 128>}, {transform_indices = @transform_2, window_bounds = array<i64: 1, 4, 2, 128>}]} {
    %c0_i32 = arith.constant 0 : i32
    %0 = arith.cmpi eq, %arg1, %c0_i32 : i32
    %1 = arith.extui %0 : i1 to i32
    %c0_i32_0 = arith.constant 0 : i32
    %2 = arith.cmpi ne, %1, %c0_i32_0 : i32
    scf.if %2 {
      %cst_37 = arith.constant 0.000000e+00 : f32
      %57 = vector.broadcast %cst_37 : f32 to vector<4x2x128xf32>
      %c0_38 = arith.constant 0 : index
      %c0_39 = arith.constant 0 : index
      %c0_40 = arith.constant 0 : index
      %58 = vector.load %arg5[%c0_38, %c0_39, %c0_40] : memref<4x2x128xf32, #tpu.memory_space<vmem>>, vector<4x2x128xf32>
      tpu.vector_store %arg5[%c0_38, %c0_39, %c0_40], %57 {strides = array<i32>} : memref<4x2x128xf32, #tpu.memory_space<vmem>>, vector<4x2x128xf32>,
    } else {
    }
    %c0 = arith.constant 0 : index
    %c0_1 = arith.constant 0 : index
    %c0_2 = arith.constant 0 : index
    %3 = vector.load %arg2[%c0, %c0_1, %c0_2] : memref<2x2x128xbf16, #tpu.memory_space<vmem>>, vector<2x2x128xbf16>
    %c0_3 = arith.constant 0 : index
    %c0_4 = arith.constant 0 : index
    %c0_5 = arith.constant 0 : index
    %4 = vector.load %arg3[%c0_3, %c0_4, %c0_5] : memref<2x2x128xbf16, #tpu.memory_space<vmem>>, vector<2x2x128xbf16>
    %5 = arith.extf %3 : vector<2x2x128xbf16> to vector<2x2x128xf32>
    %6 = arith.extf %4 : vector<2x2x128xbf16> to vector<2x2x128xf32>
    %7 = math.absf %5 : vector<2x2x128xf32>
    %cst = arith.constant 0.000000e+00 : f32
    %8 = vector.broadcast %cst : f32 to vector<2x2x128xf32>
    %9 = arith.subf %8, %7 : vector<2x2x128xf32>
    %10 = math.exp %9 : vector<2x2x128xf32>
    %cst_6 = arith.constant 1.000000e+00 : f32
    %11 = vector.broadcast %cst_6 : f32 to vector<2x2x128xf32>
    %12 = arith.addf %11, %10 : vector<2x2x128xf32>
    %13 = tpu.reciprocal %12 {approx = true} : vector<2x2x128xf32> -> vector<2x2x128xf32>
    %cst_7 = arith.constant 0.000000e+00 : f32
    %14 = vector.broadcast %cst_7 : f32 to vector<2x2x128xf32>
    %15 = arith.cmpf oge, %5, %14 : vector<2x2x128xf32>
    %cst_8 = arith.constant 1.000000e+00 : f32
    %16 = vector.broadcast %cst_8 : f32 to vector<2x2x128xf32>
    %17 = arith.subf %16, %13 : vector<2x2x128xf32>
    %18 = arith.select %15, %13, %17 : vector<2x2x128xi1>, vector<2x2x128xf32>
    %cst_9 = arith.constant 0.000000e+00 : f32
    %19 = vector.broadcast %cst_9 : f32 to vector<2x2x128xf32>
    %20 = arith.maximumf %5, %19 : vector<2x2x128xf32>
    %21 = arith.mulf %5, %6 : vector<2x2x128xf32>
    %22 = arith.subf %20, %21 : vector<2x2x128xf32>
    %23 = math.log %12 : vector<2x2x128xf32>
    %24 = arith.addf %22, %23 : vector<2x2x128xf32>
    %c0_10 = arith.constant 0 : index
    %c0_11 = arith.constant 0 : index
    %c0_12 = arith.constant 0 : index
    %25 = vector.load %arg5[%c0_10, %c0_11, %c0_12] : memref<4x2x128xf32, #tpu.memory_space<vmem>>, vector<1x2x128xf32>
    %26 = vector.shape_cast %25 : vector<1x2x128xf32> to vector<2x128xf32>
    %27 = arith.mulf %18, %6 : vector<2x2x128xf32>
    %cst_13 = arith.constant dense<0.000000e+00> : vector<2x128xf32>
    %28 = vector.multi_reduction <add>, %27, %cst_13 [1] : vector<2x2x128xf32> to vector<2x128xf32>
    %29 = arith.addf %26, %28 : vector<2x128xf32>
    %c0_14 = arith.constant 0 : index
    %c0_15 = arith.constant 0 : index
    %c0_16 = arith.constant 0 : index
    %30 = vector.load %arg5[%c0_14, %c0_15, %c0_16] : memref<4x2x128xf32, #tpu.memory_space<vmem>>, vector<1x2x128xf32>
    %31 = vector.shape_cast %30 : vector<1x2x128xf32> to vector<2x128xf32>
    %32 = vector.shape_cast %29 : vector<2x128xf32> to vector<1x2x128xf32>
    tpu.vector_store %arg5[%c0_14, %c0_15, %c0_16], %32 {strides = array<i32>} : memref<4x2x128xf32, #tpu.memory_space<vmem>>, vector<1x2x128xf32>,
    %c1 = arith.constant 1 : index
    %c0_17 = arith.constant 0 : index
    %c0_18 = arith.constant 0 : index
    %33 = vector.load %arg5[%c1, %c0_17, %c0_18] : memref<4x2x128xf32, #tpu.memory_space<vmem>>, vector<1x2x128xf32>
    %34 = vector.shape_cast %33 : vector<1x2x128xf32> to vector<2x128xf32>
    %cst_19 = arith.constant dense<0.000000e+00> : vector<2x128xf32>
    %35 = vector.multi_reduction <add>, %18, %cst_19 [1] : vector<2x2x128xf32> to vector<2x128xf32>
    %36 = arith.addf %34, %35 : vector<2x128xf32>
    %c1_20 = arith.constant 1 : index
    %c0_21 = arith.constant 0 : index
    %c0_22 = arith.constant 0 : index
    %37 = vector.load %arg5[%c1_20, %c0_21, %c0_22] : memref<4x2x128xf32, #tpu.memory_space<vmem>>, vector<1x2x128xf32>
    %38 = vector.shape_cast %37 : vector<1x2x128xf32> to vector<2x128xf32>
    %39 = vector.shape_cast %36 : vector<2x128xf32> to vector<1x2x128xf32>
    tpu.vector_store %arg5[%c1_20, %c0_21, %c0_22], %39 {strides = array<i32>} : memref<4x2x128xf32, #tpu.memory_space<vmem>>, vector<1x2x128xf32>,
    %c2 = arith.constant 2 : index
    %c0_23 = arith.constant 0 : index
    %c0_24 = arith.constant 0 : index
    %40 = vector.load %arg5[%c2, %c0_23, %c0_24] : memref<4x2x128xf32, #tpu.memory_space<vmem>>, vector<1x2x128xf32>
    %41 = vector.shape_cast %40 : vector<1x2x128xf32> to vector<2x128xf32>
    %cst_25 = arith.constant dense<0.000000e+00> : vector<2x128xf32>
    %42 = vector.multi_reduction <add>, %6, %cst_25 [1] : vector<2x2x128xf32> to vector<2x128xf32>
    %43 = arith.addf %41, %42 : vector<2x128xf32>
    %c2_26 = arith.constant 2 : index
    %c0_27 = arith.constant 0 : index
    %c0_28 = arith.constant 0 : index
    %44 = vector.load %arg5[%c2_26, %c0_27, %c0_28] : memref<4x2x128xf32, #tpu.memory_space<vmem>>, vector<1x2x128xf32>
    %45 = vector.shape_cast %44 : vector<1x2x128xf32> to vector<2x128xf32>
    %46 = vector.shape_cast %43 : vector<2x128xf32> to vector<1x2x128xf32>
    tpu.vector_store %arg5[%c2_26, %c0_27, %c0_28], %46 {strides = array<i32>} : memref<4x2x128xf32, #tpu.memory_space<vmem>>, vector<1x2x128xf32>,
    %c3 = arith.constant 3 : index
    %c0_29 = arith.constant 0 : index
    %c0_30 = arith.constant 0 : index
    %47 = vector.load %arg5[%c3, %c0_29, %c0_30] : memref<4x2x128xf32, #tpu.memory_space<vmem>>, vector<1x2x128xf32>
    %48 = vector.shape_cast %47 : vector<1x2x128xf32> to vector<2x128xf32>
    %cst_31 = arith.constant dense<0.000000e+00> : vector<2x128xf32>
    %49 = vector.multi_reduction <add>, %24, %cst_31 [1] : vector<2x2x128xf32> to vector<2x128xf32>
    %50 = arith.addf %48, %49 : vector<2x128xf32>
    %c3_32 = arith.constant 3 : index
    %c0_33 = arith.constant 0 : index
    %c0_34 = arith.constant 0 : index
    %51 = vector.load %arg5[%c3_32, %c0_33, %c0_34] : memref<4x2x128xf32, #tpu.memory_space<vmem>>, vector<1x2x128xf32>
    %52 = vector.shape_cast %51 : vector<1x2x128xf32> to vector<2x128xf32>
    %53 = vector.shape_cast %50 : vector<2x128xf32> to vector<1x2x128xf32>
    tpu.vector_store %arg5[%c3_32, %c0_33, %c0_34], %53 {strides = array<i32>} : memref<4x2x128xf32, #tpu.memory_space<vmem>>, vector<1x2x128xf32>,
    %c0_i32_35 = arith.constant 0 : i32
    %54 = arith.cmpi eq, %arg1, %c0_i32_35 : i32
    %55 = arith.extui %54 : i1 to i32
    %c0_i32_36 = arith.constant 0 : i32
    %56 = arith.cmpi ne, %55, %c0_i32_36 : i32
    scf.if %56 {
      %c0_37 = arith.constant 0 : index
      %c0_38 = arith.constant 0 : index
      %c0_39 = arith.constant 0 : index
      %57 = vector.load %arg5[%c0_37, %c0_38, %c0_39] : memref<4x2x128xf32, #tpu.memory_space<vmem>>, vector<4x2x128xf32>
      %c0_40 = arith.constant 0 : index
      %c0_41 = arith.constant 0 : index
      %c0_42 = arith.constant 0 : index
      %c0_43 = arith.constant 0 : index
      %58 = vector.load %arg4[%c0_40, %c0_41, %c0_42, %c0_43] : memref<1x4x2x128xf32, #tpu.memory_space<vmem>>, vector<1x4x2x128xf32>
      %59 = vector.shape_cast %58 : vector<1x4x2x128xf32> to vector<4x2x128xf32>
      %60 = vector.shape_cast %57 : vector<4x2x128xf32> to vector<1x4x2x128xf32>
      tpu.vector_store %arg4[%c0_40, %c0_41, %c0_42, %c0_43], %60 {strides = array<i32>} : memref<1x4x2x128xf32, #tpu.memory_space<vmem>>, vector<1x4x2x128xf32>,
    } else {
    }
    return
  }
  func.func @transform_0(%arg0: i32, %arg1: i32) -> (i32, i32, i32) {
    %c1_i32 = arith.constant 1 : i32
    %0 = arith.muli %arg0, %c1_i32 : i32
    %1 = arith.addi %0, %arg1 : i32
    %c0_i32 = arith.constant 0 : i32
    %c0_i32_0 = arith.constant 0 : i32
    %c0_i32_1 = arith.constant 0 : i32
    return %c0_i32, %1, %c0_i32_0 : i32, i32, i32
  }
  func.func @transform_1(%arg0: i32, %arg1: i32) -> (i32, i32, i32) {
    %c1_i32 = arith.constant 1 : i32
    %0 = arith.muli %arg0, %c1_i32 : i32
    %1 = arith.addi %0, %arg1 : i32
    %c0_i32 = arith.constant 0 : i32
    %c0_i32_0 = arith.constant 0 : i32
    %c0_i32_1 = arith.constant 0 : i32
    return %c0_i32, %1, %c0_i32_0 : i32, i32, i32
  }
  func.func @transform_2(%arg0: i32, %arg1: i32) -> (i32, i32, i32, i32) {
    %c0_i32 = arith.constant 0 : i32
    %c0_i32_0 = arith.constant 0 : i32
    %c0_i32_1 = arith.constant 0 : i32
    %c0_i32_2 = arith.constant 0 : i32
    return %arg0, %c0_i32, %c0_i32_0, %c0_i32_1 : i32, i32, i32, i32
  }
}

</mosaic_0001>

<llo_original>
// kernel: _lambda_.1
$region0: #{_lambda_.1}
  #allocation0 [shape = 'u32[]', space=smem, size = 0x4, offset = 0x4, fixed_abs, tag = 'smem constant byte address 0x4 - core index']
  #allocation1 [shape = 'u32[72,128]{1,0:T(1,128)}', space=vmem, size = 0x9000, scoped, tag = 'internal scratch']
  #allocation2 [shape = 'f32[4,2,128]{2,1,0:T(2,128)}', space=vmem, size = 0x1000, scoped, tag = 'scratch operand']
  %s0 = inlined_call_operand.vmem [shape: bf16[2,2,128], index: 0, kind: input, shape index: {}]
  %s1 = inlined_call_operand.vmem [shape: bf16[2,2,128], index: 1, kind: input, shape index: {}]
  %s2 = inlined_call_operand.vmem [shape: f32[1,4,2,128], index: 2, kind: output, shape index: {}]
  %s3 = sld [smem:[#allocation0]]
  $region26: #{_lambda_.1} parent=0
    _
  %s5 = ssub.s32 1, %s3
  %s6 = scalar_select 0, %s5, %s3
  // Predicated region
  $region2: #{_lambda_.1} parent=0 // pred_check
    _
  $region3: #{_lambda_.1} parent=0 // pred_check_branch
    %8 = sbr.rel (0) target = $region5
  $region4: #{_lambda_.1} parent=0 // pred_region
    %s9 = sadd.s32 0, 0
    %p10 = scmp.lt.s32.totalorder %s9, 0
    %s11 = scalar_select %p10, %s9, 0
    %s12 = scalar_lea.vmem %s0, %s11
    %s13 = sadd.s32 0, 0
  $region5: #{_lambda_.1} parent=0 // pred_fallthru
    _
  // Predicated region
  $region6: #{_lambda_.1} parent=0 // pred_check
    _
  $region7: #{_lambda_.1} parent=0 // pred_check_branch
    %15 = sbr.rel (0) target = $region9
  $region8: #{_lambda_.1} parent=0 // pred_region
    %s16 = sadd.s32 0, 0
    %p17 = scmp.lt.s32.totalorder %s16, 0
    %s18 = scalar_select %p17, %s16, 0
    %s19 = scalar_lea.vmem %s1, %s18
    %s20 = sadd.s32 0, 0
  $region9: #{_lambda_.1} parent=0 // pred_fallthru
    _
  %s21 = sadd.s32 0, 0
  %p22 = scmp.lt.s32.totalorder %s21, 0
  %s23 = scalar_select %p22, %s21, 0
  %s24 = scalar_lea.vmem %s0, %s23
  %s25 = sadd.s32 0, 0
  %p26 = scmp.lt.s32.totalorder %s25, 0
  %s27 = scalar_select %p26, %s25, 0
  %s28 = scalar_lea.vmem %s1, %s27
  %s29 = sadd.s32 0, 0
  %p30 = scmp.lt.s32.totalorder %s29, 0
  %s31 = scalar_select %p30, %s29, 0
  %s32 = scalar_lea.vmem %s0, %s31
  %s33 = sadd.s32 0, 0
  %s34 = sadd.s32 0, 0
  %p35 = scmp.lt.s32.totalorder %s34, 0
  %s36 = scalar_select %p35, %s34, 0
  %s37 = scalar_lea.vmem %s1, %s36
  %s38 = sadd.s32 0, 0
  %p39 = scmp.eq.s32.totalorder 0, 0
  // Predicated region
  $region10: #{_lambda_.1} parent=0 // pred_check
    %p40 = pneg %p39
  $region11: #{_lambda_.1} parent=0 // pred_check_branch
    %42 = sbr.rel (%p40) target = $region13
  $region12: #{_lambda_.1} parent=0 // pred_region
    %43 = vst [vmem:[#allocation2] sm:$0x3] 0.0
    %44 = vst [vmem:[#allocation2 + $0x2] sm:$0x3] 0.0
    %45 = vst [vmem:[#allocation2 + $0x4] sm:$0x3] 0.0
    %46 = vst [vmem:[#allocation2 + $0x6] sm:$0x3] 0.0
  $region13: #{_lambda_.1} parent=0 // pred_fallthru
    _
  %v47 = vld [vmem:[%s32] sm:$0x1]
  %v48 = vld [vmem:[%s32 + $0x1] sm:$0x1]
  %v49 = vld [vmem:[%s37] sm:$0x1]
  %v50 = vld [vmem:[%s37 + $0x1] sm:$0x1]
  %v51 = vunpack.c.l.bf16 %v47
  %v52 = vunpack.c.l.bf16 %v48
  %v53 = vunpack.c.l.bf16 %v49
  %v54 = vunpack.c.l.bf16 %v50
  %v55 = vand.u32 2147483647, %v51
  %v56 = vand.u32 2147483647, %v52
  %v57 = vsub.f32 0.0, %v55
  %v58 = vsub.f32 0.0, %v56
  %v59 = vmul.f32 %v57, 1.442695
  %v60 = vpow.pop %v59
  %v61 = vmul.f32 %v58, 1.442695
  %v62 = vpow.pop %v61
  %v63 = vadd.f32 %v60, 1.0
  %v64 = vadd.f32 %v62, 1.0
  %v65 = vrcp.pop %v63
  %v66 = vrcp.pop %v64
  %vm67 = vcmp.ge.f32.partialorder %v51, 0.0
  %vm68 = vcmp.ge.f32.partialorder %v52, 0.0
  %v69 = vsub.f32 1.0, %v65
  %v70 = vsub.f32 1.0, %v66
  %v71 = vsel %vm67, %v65, %v69
  %v72 = vsel %vm68, %v66, %v70
  %v73 = vmax.f32 %v51, 0.0
  %v74 = vmax.f32 %v52, 0.0
  %v75 = vmul.f32 %v51, %v53
  %v76 = vmul.f32 %v52, %v54
  %v77 = vsub.f32 %v73, %v75
  %v78 = vsub.f32 %v74, %v76
  %v79 = vlog2.pop %v63
  %v80 = vmul.f32 %v79, 0.6931472
  %v81 = vlog2.pop %v64
  %v82 = vmul.f32 %v81, 0.6931472
  %v83 = vadd.f32 %v77, %v80
  %v84 = vadd.f32 %v78, %v82
  %v85 = vld [vmem:[#allocation2] sm:$0x3]
  %v86 = vmul.f32 %v71, %v53
  %v87 = vmul.f32 %v72, %v54
  %vm88 = vcmask 1041408
  %v89 = vsel %vm88, %v86, 0.0
  %v90 = vrot.slane %v89, 4
  %v91 = vadd.f32 %v89, %v90
  %v92 = vrot.slane %v91, 2
  %v93 = vadd.f32 %v91, %v92
  %v94 = vrot.slane %v93, 1
  %v95 = vadd.f32 %v93, %v94
  %v96 = vsel %vm88, %v87, 0.0
  %v97 = vrot.slane %v96, 4
  %v98 = vadd.f32 %v96, %v97
  %v99 = vrot.slane %v98, 2
  %v100 = vadd.f32 %v98, %v99
  %v101 = vrot.slane %v100, 1
  %v102 = vadd.f32 %v100, %v101
  %vm105 = vcmask 1041409
  %v106 = vsel %vm105, %v102, %v95
  %v108 = vadd.f32 %v85, %v106
  %109 = vst [vmem:[#allocation2] sm:$0x3] %v108
  %s110 = scalar_lea.vmem [#allocation2], 2
  %v111 = vld [vmem:[%s110] sm:$0x3]
  %v112 = vsel %vm88, %v71, 0.0
  %v113 = vrot.slane %v112, 4
  %v114 = vadd.f32 %v112, %v113
  %v115 = vrot.slane %v114, 2
  %v116 = vadd.f32 %v114, %v115
  %v117 = vrot.slane %v116, 1
  %v118 = vadd.f32 %v116, %v117
  %v119 = vsel %vm88, %v72, 0.0
  %v120 = vrot.slane %v119, 4
  %v121 = vadd.f32 %v119, %v120
  %v122 = vrot.slane %v121, 2
  %v123 = vadd.f32 %v121, %v122
  %v124 = vrot.slane %v123, 1
  %v125 = vadd.f32 %v123, %v124
  %v128 = vsel %vm105, %v125, %v118
  %v130 = vadd.f32 %v111, %v128
  %131 = vst [vmem:[%s110] sm:$0x3] %v130
  %s132 = scalar_lea.vmem [#allocation2], 4
  %v133 = vld [vmem:[%s132] sm:$0x3]
  %v134 = vsel %vm88, %v53, 0.0
  %v135 = vrot.slane %v134, 4
  %v136 = vadd.f32 %v134, %v135
  %v137 = vrot.slane %v136, 2
  %v138 = vadd.f32 %v136, %v137
  %v139 = vrot.slane %v138, 1
  %v140 = vadd.f32 %v138, %v139
  %v141 = vsel %vm88, %v54, 0.0
  %v142 = vrot.slane %v141, 4
  %v143 = vadd.f32 %v141, %v142
  %v144 = vrot.slane %v143, 2
  %v145 = vadd.f32 %v143, %v144
  %v146 = vrot.slane %v145, 1
  %v147 = vadd.f32 %v145, %v146
  %v150 = vsel %vm105, %v147, %v140
  %v152 = vadd.f32 %v133, %v150
  %153 = vst [vmem:[%s132] sm:$0x3] %v152
  %s154 = scalar_lea.vmem [#allocation2], 6
  %v155 = vld [vmem:[%s154] sm:$0x3]
  %v156 = vsel %vm88, %v83, 0.0
  %v157 = vrot.slane %v156, 4
  %v158 = vadd.f32 %v156, %v157
  %v159 = vrot.slane %v158, 2
  %v160 = vadd.f32 %v158, %v159
  %v161 = vrot.slane %v160, 1
  %v162 = vadd.f32 %v160, %v161
  %v163 = vsel %vm88, %v84, 0.0
  %v164 = vrot.slane %v163, 4
  %v165 = vadd.f32 %v163, %v164
  %v166 = vrot.slane %v165, 2
  %v167 = vadd.f32 %v165, %v166
  %v168 = vrot.slane %v167, 1
  %v169 = vadd.f32 %v167, %v168
  %v172 = vsel %vm105, %v169, %v162
  %v174 = vadd.f32 %v155, %v172
  %175 = vst [vmem:[%s154] sm:$0x3] %v174
  // Predicated region
  $region14: #{_lambda_.1} parent=0 // pred_check
    %p176 = pneg %p39
  $region15: #{_lambda_.1} parent=0 // pred_check_branch
    %178 = sbr.rel (%p176) target = $region17
  $region16: #{_lambda_.1} parent=0 // pred_region
    %v179 = vld [vmem:[#allocation2] sm:$0x3]
    %v180 = vld [vmem:[#allocation2 + $0x2] sm:$0x3]
    %v181 = vld [vmem:[#allocation2 + $0x4] sm:$0x3]
    %v182 = vld [vmem:[#allocation2 + $0x6] sm:$0x3]
    %183 = vst [vmem:[%s2] sm:$0x3] %v179
    %184 = vst [vmem:[%s2 + $0x2] sm:$0x3] %v180
    %185 = vst [vmem:[%s2 + $0x4] sm:$0x3] %v181
    %186 = vst [vmem:[%s2 + $0x6] sm:$0x3] %v182
  $region17: #{_lambda_.1} parent=0 // pred_fallthru
    _
  // Predicated region
  $region18: #{_lambda_.1} parent=0 // pred_check
    _
  $region19: #{_lambda_.1} parent=0 // pred_check_branch
    %188 = sbr.rel (0) target = $region21
  $region20: #{_lambda_.1} parent=0 // pred_region
    _
  $region21: #{_lambda_.1} parent=0 // pred_fallthru
    _
  // Predicated region
  $region22: #{_lambda_.1} parent=0 // pred_check
    _
  $region23: #{_lambda_.1} parent=0 // pred_check_branch
    %190 = sbr.rel (0) target = $region25
  $region24: #{_lambda_.1} parent=0 // pred_region
    _
  $region25: #{_lambda_.1} parent=0 // pred_fallthru
    _

</llo_original>
